<compile_context>
chip_gen: v7x
topology: tpu7x:2x2x1
jax: 0.10.0
libtpu: 0.0.40
codegen_flags: <defaults>
</compile_context>

<pallas_src>
import jax
import jax.numpy as jnp
from jax import lax
from jax.experimental import pallas as pl
from jax.experimental.pallas import tpu as pltpu


def _round_up(x, m):
    return ((x + m - 1) // m) * m


# ---------------------------------------------------------------------------
# In-kernel dropout mask: splitmix32-style hash of the per-element index.
# Portable (plain jnp/lax ops) -> lowers on TPU Mosaic and in interpret mode.
# ---------------------------------------------------------------------------
def _keep_mask(shape, base_i32, p):
    """Boolean mask with P(keep) = 1 - p."""
    rows = lax.broadcasted_iota(jnp.int32, shape, 0)
    cols = lax.broadcasted_iota(jnp.int32, shape, 1)
    idx = rows * jnp.int32(shape[1]) + cols
    h = idx.astype(jnp.uint32) + base_i32.astype(jnp.uint32)
    # splitmix32 finalizer (wrapping uint32 arithmetic)
    h = h ^ (h >> jnp.uint32(16))
    h = h * jnp.uint32(0x7FEB352D)
    h = h ^ (h >> jnp.uint32(15))
    h = h * jnp.uint32(0x846CA68B)
    h = h ^ (h >> jnp.uint32(16))
    # 31 random bits, signed compare against the keep threshold
    h31 = (h & jnp.uint32(0x7FFFFFFF)).astype(jnp.int32)
    thresh = int(round((1.0 - p) * 2147483648.0))
    thresh = max(0, min(2147483647, thresh))
    return h31 < jnp.int32(thresh)


def _make_kernel(training, dp1, dp2, compute_dtype):
    training = bool(training)
    dp1 = float(dp1)
    dp2 = float(dp2)

    def kernel(seed_ref, x_ref, w1_ref, b1_ref, w2_ref, b2_ref, o_ref):
        x = x_ref[...]                              # (TB, Fp) input dtype (f32)
        xc = x.astype(compute_dtype)                # cast in VMEM, not in wrapper
        if training and dp1 > 0.0:
            base1 = ((seed_ref[0] + jnp.int32(1)) * jnp.int32(-1640531527)
                     + pl.program_id(0) * jnp.int32(69069))
            xc = jnp.where(_keep_mask(xc.shape, base1, dp1), xc, 0)

        # l1: x @ W1 on the MXU with f32 accumulation; bias + ReLU in f32
        h = jnp.dot(xc, w1_ref[...], preferred_element_type=jnp.float32)
        h = jnp.maximum(h + b1_ref[...], 0.0)

        hc = h.astype(compute_dtype)
        if training and dp2 > 0.0:
            base2 = ((seed_ref[0] + jnp.int32(2)) * jnp.int32(-1640531527)
                     + pl.program_id(0) * jnp.int32(40503))
            hc = jnp.where(_keep_mask(hc.shape, base2, dp2), hc, 0)

        # l2: h @ W2 on the MXU with f32 accumulation; bias, lane-dense store
        out = jnp.dot(hc, w2_ref[...], preferred_element_type=jnp.float32)
        o_ref[...] = (out + b2_ref[...]).astype(o_ref.dtype)

    return kernel


# ---------------------------------------------------------------------------
# One-time parameter prep (pad to lane-dense multiples of 128, cast weights to
# the compute dtype, fold inverted-dropout scales into the weights).
# ---------------------------------------------------------------------------
def prepare_params(params, *, training=False, dp1=0.5, dp2=0.5,
                   compute_dtype=jnp.bfloat16):
    w1 = jnp.asarray(params["w1"], jnp.float32)
    b1 = jnp.asarray(params["b1"], jnp.float32)
    w2 = jnp.asarray(params["w2"], jnp.float32)
    b2 = jnp.asarray(params["b2"], jnp.float32)
    F, H = w1.shape
    H2, C = w2.shape
    assert H == H2
    Fp, Hp, Cp = _round_up(F, 128), _round_up(H, 128), _round_up(C, 128)

    # (mask * x * s) @ W == (mask * x) @ (s * W): fold 1/(1-p) into the weights
    if training and 0.0 < dp1 < 1.0:
        w1 = w1 * (1.0 / (1.0 - dp1))
    if training and 0.0 < dp2 < 1.0:
        w2 = w2 * (1.0 / (1.0 - dp2))

    w1p = jnp.zeros((Fp, Hp), compute_dtype).at[:F, :H].set(w1.astype(compute_dtype))
    b1p = jnp.zeros((1, Hp), jnp.float32).at[0, :H].set(b1)
    w2p = jnp.zeros((Hp, Cp), compute_dtype).at[:H, :C].set(w2.astype(compute_dtype))
    b2p = jnp.zeros((1, Cp), jnp.float32).at[0, :C].set(b2)

    return dict(w1=w1p, b1=b1p, w2=w2p, b2=b2p, dims=(F, H, C),
                training=bool(training), dp1=float(dp1), dp2=float(dp2),
                compute_dtype=compute_dtype)


def nn_forward(x, prep, *, seed=0, block_b=1024, out_dtype=jnp.float32):
    """x: (B, n_feats) f32. Returns (B, n_classes) logits (out_dtype)."""
    F, H, C = prep["dims"]
    w1p, b1p, w2p, b2p = prep["w1"], prep["b1"], prep["w2"], prep["b2"]
    Fp, Hp = w1p.shape
    Cp = w2p.shape[1]
    cdtype = prep["compute_dtype"]

    B = x.shape[0]
    assert x.shape[1] == F

    # Batch tile: as large as block_b, but at least 2 grid steps when the batch
    # allows (v7x megacore), multiple of 8 sublanes.  At TB=1024 the per-step
    # footprint is ~5 MiB -> fits every generation's scoped-VMEM default.
    TB = max(8, min(int(block_b), _round_up(-(-B // 2), 8)))
    Bp = _round_up(B, TB)

    # Only copy/pad x when actually required (F already lane-dense and B a
    # multiple of TB in the common case -> x goes straight into the kernel).
    if (Bp, Fp) == x.shape:
        xin = x
    else:
        xin = jnp.zeros((Bp, Fp), x.dtype).at[:B, :F].set(x)

    seed_arr = jnp.asarray([seed], jnp.int32)
    kernel = _make_kernel(prep["training"], prep["dp1"], prep["dp2"], cdtype)

    x_bytes = Bp * Fp * jnp.dtype(xin.dtype).itemsize
    w_bytes = (w1p.size * w1p.dtype.itemsize + w2p.size * w2p.dtype.itemsize
               + (b1p.size + b2p.size) * 4)
    o_bytes = Bp * Cp * jnp.dtype(out_dtype).itemsize
    flops = 2 * Bp * (Fp * Hp + Hp * Cp)

    out_padded = pl.pallas_call(
        kernel,
        out_shape=jax.ShapeDtypeStruct((Bp, Cp), out_dtype),
        grid_spec=pltpu.PrefetchScalarGridSpec(
            num_scalar_prefetch=1,                    # seed lands in SMEM
            grid=(Bp // TB,),
            in_specs=[
                pl.BlockSpec((TB, Fp), lambda i, s: (i, 0)),   # x: batch-tiled
                pl.BlockSpec((Fp, Hp), lambda i, s: (0, 0)),   # W1: VMEM-resident
                pl.BlockSpec((1, Hp),  lambda i, s: (0, 0)),   # b1: resident
                pl.BlockSpec((Hp, Cp), lambda i, s: (0, 0)),   # W2: resident
                pl.BlockSpec((1, Cp),  lambda i, s: (0, 0)),   # b2: resident
            ],
            out_specs=pl.BlockSpec((TB, Cp), lambda i, s: (i, 0)),
        ),
        compiler_params=pltpu.CompilerParams(
            dimension_semantics=("parallel",),        # megacore split on v7x
        ),
        cost_estimate=pl.CostEstimate(
            flops=int(flops), transcendentals=0,
            bytes_accessed=int(x_bytes + w_bytes + o_bytes)),
    )(seed_arr, xin, w1p, b1p, w2p, b2p)

    return out_padded[:B, :C]


def init_params(key, n_feats, hidden_dim, n_classes):
    """Mirror torch.nn.Linear init; weights stored (in, out) so kernel does x @ W."""
    ks = jax.random.split(key, 4)
    s1 = 1.0 / float(n_feats) ** 0.5
    s2 = 1.0 / float(hidden_dim) ** 0.5
    return dict(
        w1=jax.random.uniform(ks[0], (n_feats, hidden_dim), jnp.float32, -s1, s1),
        b1=jax.random.uniform(ks[1], (hidden_dim,), jnp.float32, -s1, s1),
        w2=jax.random.uniform(ks[2], (hidden_dim, n_classes), jnp.float32, -s2, s2),
        b2=jax.random.uniform(ks[3], (n_classes,), jnp.float32, -s2, s2),
    )


def reference_forward(x, params, compute_dtype=jnp.bfloat16):
    """Pure-JAX eval-mode reference with the same bf16-operand / f32-accum casts."""
    h = jnp.dot(x.astype(compute_dtype), params["w1"].astype(compute_dtype),
                preferred_element_type=jnp.float32) + params["b1"][None, :]
    h = jnp.maximum(h, 0.0)
    out = jnp.dot(h.astype(compute_dtype), params["w2"].astype(compute_dtype),
                  preferred_element_type=jnp.float32) + params["b2"][None, :]
    return out


if __name__ == "__main__":
    key = jax.random.PRNGKey(0)
    k_x, k_p, k_x2 = jax.random.split(key, 3)

    n_feats, hidden_dim, n_classes = 384, 256, 10
    params = init_params(k_p, n_feats, hidden_dim, n_classes)

    # one-time prep (eval mode: dropout is identity, like torch .eval())
    prep_eval = prepare_params(params, training=False)

    # small batch (spec-like)
    B = 2
    x = jax.random.normal(k_x, (B, n_feats), dtype=jnp.float32)
    out = nn_forward(x, prep_eval)
    jax.block_until_ready(out)
    ref = reference_forward(x, params)
    assert out.shape == (B, n_classes)
    assert jnp.allclose(out, ref, atol=5e-3, rtol=5e-3)

    # larger batch to exercise the batch-tiled, pipelined grid (2 tiles of 256 rows)
    B2 = 512
    x2 = jax.random.normal(k_x2, (B2, n_feats), dtype=jnp.float32)
    out2 = nn_forward(x2, prep_eval, block_b=1024)
    jax.block_until_ready(out2)
    ref2 = reference_forward(x2, params)
    assert out2.shape == (B2, n_classes)
    assert jnp.allclose(out2, ref2, atol=5e-3, rtol=5e-3)

    # training-mode smoke test (hash-based in-kernel dropout, p=0.5/0.5,
    # inverted-dropout scale folded into the prepped weights)
    prep_train = prepare_params(params, training=True, dp1=0.5, dp2=0.5)
    out_tr = nn_forward(x2, prep_train, seed=123)
    jax.block_until_ready(out_tr)
    assert out_tr.shape == (B2, n_classes)
    assert bool(jnp.all(jnp.isfinite(out_tr)))

    print("KERNEL_OK")
</pallas_src>

<mosaic_0001>
module attributes {stable_mosaic.version = 11 : i64} {
  func.func @kernel(%arg0: i32, %arg1: memref<1xi32, #tpu.memory_space<smem>>, %arg2: memref<8x384xf32, #tpu.memory_space<vmem>>, %arg3: memref<384x256xbf16, #tpu.memory_space<vmem>>, %arg4: memref<1x256xf32, #tpu.memory_space<vmem>>, %arg5: memref<256x128xbf16, #tpu.memory_space<vmem>>, %arg6: memref<1x128xf32, #tpu.memory_space<vmem>>, %arg7: memref<8x128xf32, #tpu.memory_space<vmem>>) attributes {dimension_semantics = [#tpu.dimension_semantics<parallel>], iteration_bounds = array<i64: 1>, scalar_prefetch = 1 : i64, scratch_operands = 0 : i64, tpu.core_type = #tpu.core_type<tc>, window_params = [{transform_indices = @transform_0, window_bounds = array<i64: 8, 384>}, {pipeline_mode = #tpu.pipeline_mode<synchronous>, transform_indices = @transform_1, window_bounds = array<i64: 384, 256>}, {pipeline_mode = #tpu.pipeline_mode<synchronous>, transform_indices = @transform_2, window_bounds = array<i64: 1, 256>}, {pipeline_mode = #tpu.pipeline_mode<synchronous>, transform_indices = @transform_3, window_bounds = array<i64: 256, 128>}, {pipeline_mode = #tpu.pipeline_mode<synchronous>, transform_indices = @transform_4, window_bounds = array<i64: 1, 128>}, {transform_indices = @transform_5, window_bounds = array<i64: 8, 128>}]} {
    %c0 = arith.constant 0 : index
    %c0_0 = arith.constant 0 : index
    %0 = vector.load %arg2[%c0, %c0_0] : memref<8x384xf32, #tpu.memory_space<vmem>>, vector<8x384xf32>
    %1 = arith.truncf %0 : vector<8x384xf32> to vector<8x384xbf16>
    %c0_1 = arith.constant 0 : index
    %c0_2 = arith.constant 0 : index
    %2 = vector.load %arg3[%c0_1, %c0_2] : memref<384x256xbf16, #tpu.memory_space<vmem>>, vector<384x256xbf16>
    %cst = arith.constant dense<0.000000e+00> : vector<8x256xf32>
    %3 = tpu.matmul %1, %2, %cst {dimension_numbers = #tpu.dot_dimension_numbers<[1], [0], [0], [1], [0, 0, 1, 1], [], []>} : vector<8x384xbf16>, vector<384x256xbf16>, vector<8x256xf32> -> vector<8x256xf32>
    %c0_3 = arith.constant 0 : index
    %c0_4 = arith.constant 0 : index
    %4 = vector.load %arg4[%c0_3, %c0_4] : memref<1x256xf32, #tpu.memory_space<vmem>>, vector<1x256xf32>
    %5 = vector.broadcast %4 : vector<1x256xf32> to vector<8x256xf32>
    %6 = arith.addf %3, %5 : vector<8x256xf32>
    %cst_5 = arith.constant 0.000000e+00 : f32
    %7 = vector.broadcast %cst_5 : f32 to vector<8x256xf32>
    %8 = arith.maximumf %6, %7 : vector<8x256xf32>
    %9 = arith.truncf %8 : vector<8x256xf32> to vector<8x256xbf16>
    %c0_6 = arith.constant 0 : index
    %c0_7 = arith.constant 0 : index
    %10 = vector.load %arg5[%c0_6, %c0_7] : memref<256x128xbf16, #tpu.memory_space<vmem>>, vector<256x128xbf16>
    %cst_8 = arith.constant dense<0.000000e+00> : vector<8x128xf32>
    %11 = tpu.matmul %9, %10, %cst_8 {dimension_numbers = #tpu.dot_dimension_numbers<[1], [0], [0], [1], [0, 0, 1, 1], [], []>} : vector<8x256xbf16>, vector<256x128xbf16>, vector<8x128xf32> -> vector<8x128xf32>
    %c0_9 = arith.constant 0 : index
    %c0_10 = arith.constant 0 : index
    %12 = vector.load %arg6[%c0_9, %c0_10] : memref<1x128xf32, #tpu.memory_space<vmem>>, vector<1x128xf32>
    %13 = vector.broadcast %12 : vector<1x128xf32> to vector<8x128xf32>
    %14 = arith.addf %11, %13 : vector<8x128xf32>
    %c0_11 = arith.constant 0 : index
    %c0_12 = arith.constant 0 : index
    %15 = vector.load %arg7[%c0_11, %c0_12] : memref<8x128xf32, #tpu.memory_space<vmem>>, vector<8x128xf32>
    tpu.vector_store %arg7[%c0_11, %c0_12], %14 {strides = array<i32>} : memref<8x128xf32, #tpu.memory_space<vmem>>, vector<8x128xf32>,
    return
  }
  func.func @transform_0(%arg0: i32, %arg1: memref<1xi32, #tpu.memory_space<smem>>) -> (i32, i32) {
    %c0_i32 = arith.constant 0 : i32
    %c0_i32_0 = arith.constant 0 : i32
    return %arg0, %c0_i32 : i32, i32
  }
  func.func @transform_1(%arg0: i32, %arg1: memref<1xi32, #tpu.memory_space<smem>>) -> (i32, i32) {
    %c0_i32 = arith.constant 0 : i32
    %c0_i32_0 = arith.constant 0 : i32
    %c0_i32_1 = arith.constant 0 : i32
    return %c0_i32, %c0_i32_0 : i32, i32
  }
  func.func @transform_2(%arg0: i32, %arg1: memref<1xi32, #tpu.memory_space<smem>>) -> (i32, i32) {
    %c0_i32 = arith.constant 0 : i32
    %c0_i32_0 = arith.constant 0 : i32
    %c0_i32_1 = arith.constant 0 : i32
    return %c0_i32, %c0_i32_0 : i32, i32
  }
  func.func @transform_3(%arg0: i32, %arg1: memref<1xi32, #tpu.memory_space<smem>>) -> (i32, i32) {
    %c0_i32 = arith.constant 0 : i32
    %c0_i32_0 = arith.constant 0 : i32
    %c0_i32_1 = arith.constant 0 : i32
    return %c0_i32, %c0_i32_0 : i32, i32
  }
  func.func @transform_4(%arg0: i32, %arg1: memref<1xi32, #tpu.memory_space<smem>>) -> (i32, i32) {
    %c0_i32 = arith.constant 0 : i32
    %c0_i32_0 = arith.constant 0 : i32
    %c0_i32_1 = arith.constant 0 : i32
    return %c0_i32, %c0_i32_0 : i32, i32
  }
  func.func @transform_5(%arg0: i32, %arg1: memref<1xi32, #tpu.memory_space<smem>>) -> (i32, i32) {
    %c0_i32 = arith.constant 0 : i32
    %c0_i32_0 = arith.constant 0 : i32
    return %arg0, %c0_i32 : i32, i32
  }
}

</mosaic_0001>

<llo_original>
// kernel: tpu_custom_call.1
$region0: #{tpu_custom_call.1}
  #allocation0 [shape = 'u32[]', space=smem, size = 0x4, offset = 0x4, fixed_abs, tag = 'smem constant byte address 0x4 - core index']
  #allocation1 [shape = 'u32[144,128]{1,0:T(1,128)}', space=vmem, size = 0x12000, scoped, tag = 'internal scratch']
  #allocation2 [shape = 's32[1]{0}', space=sflag, size = 0x4, scoped, tag = 'scoped memory for tpu_custom_call.1']
  #allocation3 [shape = 's32[1]{0:T(128)S(6)}', space=smem, size = 0x200, scoped, tag = 'prefetched SMEM operand 0']
  %s0 = inlined_call_operand.<no memory space> [shape: s32[1], index: 0, kind: input, shape index: {}]
  %s1 = inlined_call_operand.hbm [shape: f32[8,384], index: 1, kind: input, shape index: {}]
  %s2 = inlined_call_operand.hbm [shape: bf16[384,256], index: 2, kind: input, shape index: {}]
  %s3 = inlined_call_operand.vmem [shape: f32[1,256], index: 3, kind: input, shape index: {}]
  %s4 = inlined_call_operand.hbm [shape: bf16[256,128], index: 4, kind: input, shape index: {}]
  %s5 = inlined_call_operand.vmem [shape: f32[1,128], index: 5, kind: input, shape index: {}]
  %s6 = inlined_call_operand.hbm [shape: f32[8,128], index: 6, kind: output, shape index: {}]
  %s7 = sld [smem:[#allocation0]]
  $region42: #{tpu_custom_call.1} parent=0
    _
  %s9 = ssub.s32 1, %s7
  %s10 = scalar_select 0, %s9, %s7
  %11 = sst [smem:[#allocation3]] %s0
  $region1: #{tpu_custom_call.1} parent=0
    #allocation4 [shape = 'u8[12288]{0}', space=vmem, size = 0x3000, scoped, tag = 'input window, operand 1, single buffered']
    #allocation5 [shape = 's32[1]{0}', space=sflag, size = 0x4, scoped, tag = 'scoped memory for tpu_custom_call.1']
    #allocation6 [shape = 's32[1]{0}', space=sflag, size = 0x4, scoped, tag = 'scoped memory for tpu_custom_call.1']
    #allocation7 [shape = 'u8[196608]{0}', space=vmem, size = 0x30000, scoped, tag = 'input window, operand 2, single buffered']
    #allocation8 [shape = 's32[1]{0}', space=sflag, size = 0x4, scoped, tag = 'scoped memory for tpu_custom_call.1']
    #allocation9 [shape = 'u8[65536]{0}', space=vmem, size = 0x10000, scoped, tag = 'input window, operand 4, single buffered']
    #allocation10 [shape = 'u8[4096]{0}', space=vmem, size = 0x1000, scoped, tag = 'output window, operand 0, single buffered']
    %12 = vsyncpa [#allocation5], 0
    %13 = vsyncpa [#allocation8], 0
    %14 = vsyncpa [#allocation6], 0
    // Predicated region
    $region2: #{tpu_custom_call.1} parent=1 // pred_check
      _
    $region3: #{tpu_custom_call.1} parent=1 // pred_check_branch
      %16 = sbr.rel (0) target = $region5
    $region4: #{tpu_custom_call.1} parent=1 // pred_region
      %s18 = ssub.s32 384, 384
      %19 = vsyncadd [#allocation5], %s18
      %s21 = sshll.u32 [#allocation4], 4
      %s22 = int_to_ptr.vmem [resolvable:$true] %s21
      %24 = dma.hbm_to_vmem [thread:$0]  %s1, 384, %s22, [#allocation5]
    $region5: #{tpu_custom_call.1} parent=1 // pred_fallthru
      _
    // Predicated region
    $region6: #{tpu_custom_call.1} parent=1 // pred_check
      _
    $region7: #{tpu_custom_call.1} parent=1 // pred_check_branch
      %26 = sbr.rel (0) target = $region9
    $region8: #{tpu_custom_call.1} parent=1 // pred_region
      %s28 = ssub.s32 6144, 6144
      %29 = vsyncadd [#allocation8], %s28
      %s30 = sshll.u32 [#allocation7], 4
      %s31 = int_to_ptr.vmem [resolvable:$true] %s30
      %36 = dma.hbm_to_vmem [thread:$0]  %s2, 6144, %s31, [#allocation8], 128, 128, 8
    $region9: #{tpu_custom_call.1} parent=1 // pred_fallthru
      _
    // Predicated region
    $region10: #{tpu_custom_call.1} parent=1 // pred_check
      _
    $region11: #{tpu_custom_call.1} parent=1 // pred_check_branch
      %38 = sbr.rel (0) target = $region13
    $region12: #{tpu_custom_call.1} parent=1 // pred_region
      _
    $region13: #{tpu_custom_call.1} parent=1 // pred_fallthru
      _
    // Predicated region
    $region14: #{tpu_custom_call.1} parent=1 // pred_check
      _
    $region15: #{tpu_custom_call.1} parent=1 // pred_check_branch
      %40 = sbr.rel (0) target = $region17
    $region16: #{tpu_custom_call.1} parent=1 // pred_region
      %s42 = ssub.s32 2048, 2048
      %43 = vsyncadd [#allocation8], %s42
      %s44 = sshll.u32 [#allocation9], 4
      %s45 = int_to_ptr.vmem [resolvable:$true] %s44
      %50 = dma.hbm_to_vmem [thread:$0]  %s4, 2048, %s45, [#allocation8], 64, 64, 4
    $region17: #{tpu_custom_call.1} parent=1 // pred_fallthru
      _
    // Predicated region
    $region18: #{tpu_custom_call.1} parent=1 // pred_check
      _
    $region19: #{tpu_custom_call.1} parent=1 // pred_check_branch
      %52 = sbr.rel (0) target = $region21
    $region20: #{tpu_custom_call.1} parent=1 // pred_region
      _
    $region21: #{tpu_custom_call.1} parent=1 // pred_fallthru
      _
    // Predicated region
    $region22: #{tpu_custom_call.1} parent=1 // pred_check
      _
    $region23: #{tpu_custom_call.1} parent=1 // pred_check_branch
      %54 = sbr.rel (0) target = $region25
    $region24: #{tpu_custom_call.1} parent=1 // pred_region
      %55 = dma.done [#allocation5], 384
    $region25: #{tpu_custom_call.1} parent=1 // pred_fallthru
      _
    // Predicated region
    $region26: #{tpu_custom_call.1} parent=1 // pred_check
      _
    $region27: #{tpu_custom_call.1} parent=1 // pred_check_branch
      %57 = sbr.rel (0) target = $region29
    $region28: #{tpu_custom_call.1} parent=1 // pred_region
      %58 = dma.done [#allocation8], 6144
    $region29: #{tpu_custom_call.1} parent=1 // pred_fallthru
      _
    // Predicated region
    $region30: #{tpu_custom_call.1} parent=1 // pred_check
      _
    $region31: #{tpu_custom_call.1} parent=1 // pred_check_branch
      %60 = sbr.rel (0) target = $region33
    $region32: #{tpu_custom_call.1} parent=1 // pred_region
      %61 = dma.done [#allocation8], 2048
    $region33: #{tpu_custom_call.1} parent=1 // pred_fallthru
      _
    %v63 = vld [vmem:[#allocation4] sm:$0xff]
    %v64 = vld [vmem:[#allocation4 + $0x8] sm:$0xff]
    %v65 = vld [vmem:[#allocation4 + $0x10] sm:$0xff]
    %v66 = vpack.c.bf16 %v63, %v63
    %v67 = vpack.c.bf16 %v64, %v64
    %v68 = vpack.c.bf16 %v65, %v65
    %v69 = vld [vmem:[#allocation7] sm:$0xff]
    %v70 = vld [vmem:[#allocation7 + $0x8] sm:$0xff]
    %v71 = vld [vmem:[#allocation7 + $0x10] sm:$0xff]
    %v72 = vld [vmem:[#allocation7 + $0x18] sm:$0xff]
    %v73 = vld [vmem:[#allocation7 + $0x20] sm:$0xff]
    %v74 = vld [vmem:[#allocation7 + $0x28] sm:$0xff]
    %v75 = vld [vmem:[#allocation7 + $0x30] sm:$0xff]
    %v76 = vld [vmem:[#allocation7 + $0x38] sm:$0xff]
    %v77 = vld [vmem:[#allocation7 + $0x40] sm:$0xff]
    %v78 = vld [vmem:[#allocation7 + $0x48] sm:$0xff]
    %v79 = vld [vmem:[#allocation7 + $0x50] sm:$0xff]
    %v80 = vld [vmem:[#allocation7 + $0x58] sm:$0xff]
    %v81 = vld [vmem:[#allocation7 + $0x60] sm:$0xff]
    %v82 = vld [vmem:[#allocation7 + $0x68] sm:$0xff]
    %v83 = vld [vmem:[#allocation7 + $0x70] sm:$0xff]
    %v84 = vld [vmem:[#allocation7 + $0x78] sm:$0xff]
    %v85 = vld [vmem:[#allocation7 + $0x80] sm:$0xff]
    %v86 = vld [vmem:[#allocation7 + $0x88] sm:$0xff]
    %v87 = vld [vmem:[#allocation7 + $0x90] sm:$0xff]
    %v88 = vld [vmem:[#allocation7 + $0x98] sm:$0xff]
    %v89 = vld [vmem:[#allocation7 + $0xa0] sm:$0xff]
    %v90 = vld [vmem:[#allocation7 + $0xa8] sm:$0xff]
    %v91 = vld [vmem:[#allocation7 + $0xb0] sm:$0xff]
    %v92 = vld [vmem:[#allocation7 + $0xb8] sm:$0xff]
    %v93 = vld [vmem:[#allocation7 + $0xc0] sm:$0xff]
    %v94 = vld [vmem:[#allocation7 + $0xc8] sm:$0xff]
    %v95 = vld [vmem:[#allocation7 + $0xd0] sm:$0xff]
    %v96 = vld [vmem:[#allocation7 + $0xd8] sm:$0xff]
    %v97 = vld [vmem:[#allocation7 + $0xe0] sm:$0xff]
    %v98 = vld [vmem:[#allocation7 + $0xe8] sm:$0xff]
    %v99 = vld [vmem:[#allocation7 + $0xf0] sm:$0xff]
    %v100 = vld [vmem:[#allocation7 + $0xf8] sm:$0xff]
    %v101 = vld [vmem:[#allocation7 + $0x100] sm:$0xff]
    %v102 = vld [vmem:[#allocation7 + $0x108] sm:$0xff]
    %v103 = vld [vmem:[#allocation7 + $0x110] sm:$0xff]
    %v104 = vld [vmem:[#allocation7 + $0x118] sm:$0xff]
    %v105 = vld [vmem:[#allocation7 + $0x120] sm:$0xff]
    %v106 = vld [vmem:[#allocation7 + $0x128] sm:$0xff]
    %v107 = vld [vmem:[#allocation7 + $0x130] sm:$0xff]
    %v108 = vld [vmem:[#allocation7 + $0x138] sm:$0xff]
    %v109 = vld [vmem:[#allocation7 + $0x140] sm:$0xff]
    %v110 = vld [vmem:[#allocation7 + $0x148] sm:$0xff]
    %v111 = vld [vmem:[#allocation7 + $0x150] sm:$0xff]
    %v112 = vld [vmem:[#allocation7 + $0x158] sm:$0xff]
    %v113 = vld [vmem:[#allocation7 + $0x160] sm:$0xff]
    %v114 = vld [vmem:[#allocation7 + $0x168] sm:$0xff]
    %v115 = vld [vmem:[#allocation7 + $0x170] sm:$0xff]
    %v116 = vld [vmem:[#allocation7 + $0x178] sm:$0xff]
    %v117 = vld [vmem:[%s3] sm:$0x3]
    %v119 = vlaneseq
    %v120 = vshrl.u32 %v119, 7
    %v121 = vsub.s32 0, %v120
    %v122 = vrot.slane %v117, %v121
    %v123 = vlaneseq
    %v124 = vshrl.u32 %v123, 7
    %v125 = vsub.s32 1, %v124
    %v126 = vrot.slane %v117, %v125
    %v177 = vunpack.c.l.b16 %v69
    %v178 = vunpack.c.h.b16 %v69
    %v179 = vunpack.c.l.b16 %v70
    %v180 = vunpack.c.h.b16 %v70
    %v181 = vunpack.c.l.b16 %v71
    %v182 = vunpack.c.h.b16 %v71
    %v183 = vunpack.c.l.b16 %v72
    %v184 = vunpack.c.h.b16 %v72
    %v185 = vunpack.c.l.b16 %v73
    %v186 = vunpack.c.h.b16 %v73
    %v187 = vunpack.c.l.b16 %v74
    %v188 = vunpack.c.h.b16 %v74
    %v189 = vunpack.c.l.b16 %v75
    %v190 = vunpack.c.h.b16 %v75
    %v191 = vunpack.c.l.b16 %v76
    %v192 = vunpack.c.h.b16 %v76
    %v193 = vunpack.c.l.b16 %v77
    %v194 = vunpack.c.h.b16 %v77
    %v195 = vunpack.c.l.b16 %v78
    %v196 = vunpack.c.h.b16 %v78
    %v197 = vunpack.c.l.b16 %v79
    %v198 = vunpack.c.h.b16 %v79
    %v199 = vunpack.c.l.b16 %v80
    %v200 = vunpack.c.h.b16 %v80
    %v201 = vunpack.c.l.b16 %v81
    %v202 = vunpack.c.h.b16 %v81
    %v203 = vunpack.c.l.b16 %v82
    %v204 = vunpack.c.h.b16 %v82
    %v205 = vunpack.c.l.b16 %v83
    %v206 = vunpack.c.h.b16 %v83
    %v207 = vunpack.c.l.b16 %v84
    %v208 = vunpack.c.h.b16 %v84
    %v209 = vunpack.c.l.b16 %v85
    %v210 = vunpack.c.h.b16 %v85
    %v211 = vunpack.c.l.b16 %v86
    %v212 = vunpack.c.h.b16 %v86
    %v213 = vunpack.c.l.b16 %v87
    %v214 = vunpack.c.h.b16 %v87
    %v215 = vunpack.c.l.b16 %v88
    %v216 = vunpack.c.h.b16 %v88
    %v217 = vunpack.c.l.b16 %v89
    %v218 = vunpack.c.h.b16 %v89
    %v219 = vunpack.c.l.b16 %v90
    %v220 = vunpack.c.h.b16 %v90
    %v221 = vunpack.c.l.b16 %v91
    %v222 = vunpack.c.h.b16 %v91
    %v223 = vunpack.c.l.b16 %v92
    %v224 = vunpack.c.h.b16 %v92
    %v225 = vunpack.c.l.b16 %v93
    %v226 = vunpack.c.h.b16 %v93
    %v227 = vunpack.c.l.b16 %v94
    %v228 = vunpack.c.h.b16 %v94
    %v229 = vunpack.c.l.b16 %v95
    %v230 = vunpack.c.h.b16 %v95
    %v231 = vunpack.c.l.b16 %v96
    %v232 = vunpack.c.h.b16 %v96
    %v233 = vunpack.c.l.b16 %v97
    %v234 = vunpack.c.h.b16 %v97
    %v235 = vunpack.c.l.b16 %v98
    %v236 = vunpack.c.h.b16 %v98
    %v237 = vunpack.c.l.b16 %v99
    %v238 = vunpack.c.h.b16 %v99
    %v239 = vunpack.c.l.b16 %v100
    %v240 = vunpack.c.h.b16 %v100
    %v241 = vunpack.c.l.b16 %v101
    %v242 = vunpack.c.h.b16 %v101
    %v243 = vunpack.c.l.b16 %v102
    %v244 = vunpack.c.h.b16 %v102
    %v245 = vunpack.c.l.b16 %v103
    %v246 = vunpack.c.h.b16 %v103
    %v247 = vunpack.c.l.b16 %v104
    %v248 = vunpack.c.h.b16 %v104
    %v249 = vunpack.c.l.b16 %v105
    %v250 = vunpack.c.h.b16 %v105
    %v251 = vunpack.c.l.b16 %v106
    %v252 = vunpack.c.h.b16 %v106
    %v253 = vunpack.c.l.b16 %v107
    %v254 = vunpack.c.h.b16 %v107
    %v255 = vunpack.c.l.b16 %v108
    %v256 = vunpack.c.h.b16 %v108
    %v257 = vunpack.c.l.b16 %v109
    %v258 = vunpack.c.h.b16 %v109
    %v259 = vunpack.c.l.b16 %v110
    %v260 = vunpack.c.h.b16 %v110
    %v261 = vunpack.c.l.b16 %v111
    %v262 = vunpack.c.h.b16 %v111
    %v263 = vunpack.c.l.b16 %v112
    %v264 = vunpack.c.h.b16 %v112
    %v265 = vunpack.c.l.b16 %v113
    %v266 = vunpack.c.h.b16 %v113
    %v267 = vunpack.c.l.b16 %v114
    %v268 = vunpack.c.h.b16 %v114
    %v269 = vunpack.c.l.b16 %v115
    %v270 = vunpack.c.h.b16 %v115
    %v271 = vunpack.c.l.b16 %v116
    %v272 = vunpack.c.h.b16 %v116
    %v273 = vpack.c.b16 %v179, %v177
    %v274 = vpack.c.b16 %v180, %v178
    %v275 = vpack.c.b16 %v183, %v181
    %v276 = vpack.c.b16 %v184, %v182
    %v277 = vpack.c.b16 %v187, %v185
    %v278 = vpack.c.b16 %v188, %v186
    %v279 = vpack.c.b16 %v191, %v189
    %v280 = vpack.c.b16 %v192, %v190
    %v281 = vpack.c.b16 %v195, %v193
    %v282 = vpack.c.b16 %v196, %v194
    %v283 = vpack.c.b16 %v199, %v197
    %v284 = vpack.c.b16 %v200, %v198
    %v285 = vpack.c.b16 %v203, %v201
    %v286 = vpack.c.b16 %v204, %v202
    %v287 = vpack.c.b16 %v207, %v205
    %v288 = vpack.c.b16 %v208, %v206
    %v289 = vpack.c.b16 %v211, %v209
    %v290 = vpack.c.b16 %v212, %v210
    %v291 = vpack.c.b16 %v215, %v213
    %v292 = vpack.c.b16 %v216, %v214
    %v293 = vpack.c.b16 %v219, %v217
    %v294 = vpack.c.b16 %v220, %v218
    %v295 = vpack.c.b16 %v223, %v221
    %v296 = vpack.c.b16 %v224, %v222
    %v297 = vpack.c.b16 %v227, %v225
    %v298 = vpack.c.b16 %v228, %v226
    %v299 = vpack.c.b16 %v231, %v229
    %v300 = vpack.c.b16 %v232, %v230
    %v301 = vpack.c.b16 %v235, %v233
    %v302 = vpack.c.b16 %v236, %v234
    %v303 = vpack.c.b16 %v239, %v237
    %v304 = vpack.c.b16 %v240, %v238
    %v305 = vpack.c.b16 %v243, %v241
    %v306 = vpack.c.b16 %v244, %v242
    %v307 = vpack.c.b16 %v247, %v245
    %v308 = vpack.c.b16 %v248, %v246
    %v309 = vpack.c.b16 %v251, %v249
    %v310 = vpack.c.b16 %v252, %v250
    %v311 = vpack.c.b16 %v255, %v253
    %v312 = vpack.c.b16 %v256, %v254
    %v313 = vpack.c.b16 %v259, %v257
    %v314 = vpack.c.b16 %v260, %v258
    %v315 = vpack.c.b16 %v263, %v261
    %v316 = vpack.c.b16 %v264, %v262
    %v317 = vpack.c.b16 %v267, %v265
    %v318 = vpack.c.b16 %v268, %v266
    %v319 = vpack.c.b16 %v271, %v269
    %v320 = vpack.c.b16 %v272, %v270
    %369 = vmatprep.subr.bf16.mxu0 %v274
    %370 = vmatpush1.bf16.msra.mxu0 %v273
    %371 = vmatprep.subr.bf16.mxu0 %v276
    %372 = vmatpush1.bf16.msra.mxu0 %v275
    %373 = vmatprep.subr.bf16.mxu0 %v278
    %374 = vmatpush1.bf16.msra.mxu0 %v277
    %375 = vmatprep.subr.bf16.mxu0 %v280
    %376 = vmatpush1.bf16.msra.mxu0 %v279
    %377 = vmatprep.subr.bf16.mxu0 %v282
    %378 = vmatpush1.bf16.msra.mxu0 %v281
    %379 = vmatprep.subr.bf16.mxu0 %v284
    %380 = vmatpush1.bf16.msra.mxu0 %v283
    %381 = vmatprep.subr.bf16.mxu0 %v286
    %382 = vmatpush1.bf16.msra.mxu0 %v285
    %383 = vmatprep.subr.bf16.mxu0 %v288
    %384 = vmatpush1.bf16.msra.mxu0 %v287
    %385 = vmatprep.subr.bf16.mxu0 %v290
    %386 = vmatpush1.bf16.msra.mxu0 %v289
    %387 = vmatprep.subr.bf16.mxu0 %v292
    %388 = vmatpush1.bf16.msra.mxu0 %v291
    %389 = vmatprep.subr.bf16.mxu0 %v294
    %390 = vmatpush1.bf16.msra.mxu0 %v293
    %391 = vmatprep.subr.bf16.mxu0 %v296
    %392 = vmatpush1.bf16.msra.mxu0 %v295
    %393 = vmatprep.subr.bf16.mxu0 %v298
    %394 = vmatpush1.bf16.msra.mxu0 %v297
    %395 = vmatprep.subr.bf16.mxu0 %v300
    %396 = vmatpush1.bf16.msra.mxu0 %v299
    %397 = vmatprep.subr.bf16.mxu0 %v302
    %398 = vmatpush1.bf16.msra.mxu0 %v301
    %399 = vmatprep.subr.bf16.mxu0 %v304
    %400 = vmatpush1.bf16.msra.mxu0 %v303
    %401 = vmatprep.mubr.bf16.mxu0 %v67
    %402 = vmatmul.mubr.bf16.gmra.mrb[0].mxu0 %v66
    %v403 = vpop.f32.mrb[0].mxu0
    %v404 = vadd.f32 %v122, %v403
    %v405 = vpop.f32.mrb[0].mxu0
    %v406 = vadd.f32 %v126, %v405
    %v407 = vpop.f32.mrb[0].mxu0
    %v408 = vpop.f32.mrb[0].mxu0
    %409 = vdwg.mxu0
    %410 = vmatprep.subr.bf16.mxu0 %v306
    %411 = vmatpush1.bf16.msra.mxu0 %v305
    %412 = vmatprep.subr.bf16.mxu0 %v308
    %413 = vmatpush1.bf16.msra.mxu0 %v307
    %414 = vmatprep.subr.bf16.mxu0 %v310
    %415 = vmatpush1.bf16.msra.mxu0 %v309
    %416 = vmatprep.subr.bf16.mxu0 %v312
    %417 = vmatpush1.bf16.msra.mxu0 %v311
    %418 = vmatprep.subr.bf16.mxu0 %v314
    %419 = vmatpush1.bf16.msra.mxu0 %v313
    %420 = vmatprep.subr.bf16.mxu0 %v316
    %421 = vmatpush1.bf16.msra.mxu0 %v315
    %422 = vmatprep.subr.bf16.mxu0 %v318
    %423 = vmatpush1.bf16.msra.mxu0 %v317
    %424 = vmatprep.subr.bf16.mxu0 %v320
    %425 = vmatpush1.bf16.msra.mxu0 %v319
    %426 = vmatprep.subr.bf16.mxu0 0
    %427 = vmatpush1.bf16.msra.mxu0 0
    %428 = vmatprep.subr.bf16.mxu0 0
    %429 = vmatpush1.bf16.msra.mxu0 0
    %430 = vmatprep.subr.bf16.mxu0 0
    %431 = vmatpush1.bf16.msra.mxu0 0
    %432 = vmatprep.subr.bf16.mxu0 0
    %433 = vmatpush1.bf16.msra.mxu0 0
    %434 = vmatprep.subr.bf16.mxu0 0
    %435 = vmatpush1.bf16.msra.mxu0 0
    %436 = vmatprep.subr.bf16.mxu0 0
    %437 = vmatpush1.bf16.msra.mxu0 0
    %438 = vmatprep.subr.bf16.mxu0 0
    %439 = vmatpush1.bf16.msra.mxu0 0
    %440 = vmatprep.subr.bf16.mxu0 0
    %441 = vmatpush1.bf16.msra.mxu0 0
    %442 = vmatprep.mubr.bf16.mxu0 0
    %443 = vmatmul.mubr.bf16.gmra.mrb[0].mxu0 %v68
    %v444 = vpop.f32.mrb[0].mxu0
    %v445 = vadd.f32 %v404, %v444
    %v446 = vpop.f32.mrb[0].mxu0
    %v447 = vadd.f32 %v406, %v446
    %v448 = vpop.f32.mrb[0].mxu0
    %v449 = vpop.f32.mrb[0].mxu0
    %450 = vdwg.mxu0
    %v451 = vmax.f32 %v445, 0.0
    %v452 = vmax.f32 %v447, 0.0
    %v453 = vpack.c.bf16 %v451, %v451
    %v454 = vpack.c.bf16 %v452, %v452
    %v455 = vld [vmem:[#allocation9] sm:$0xf]
    %v456 = vld [vmem:[#allocation9 + $0x4] sm:$0xf]
    %v457 = vld [vmem:[#allocation9 + $0x8] sm:$0xf]
    %v458 = vld [vmem:[#allocation9 + $0xc] sm:$0xf]
    %v459 = vld [vmem:[#allocation9 + $0x10] sm:$0xf]
    %v460 = vld [vmem:[#allocation9 + $0x14] sm:$0xf]
    %v461 = vld [vmem:[#allocation9 + $0x18] sm:$0xf]
    %v462 = vld [vmem:[#allocation9 + $0x1c] sm:$0xf]
    %v463 = vld [vmem:[#allocation9 + $0x20] sm:$0xf]
    %v464 = vld [vmem:[#allocation9 + $0x24] sm:$0xf]
    %v465 = vld [vmem:[#allocation9 + $0x28] sm:$0xf]
    %v466 = vld [vmem:[#allocation9 + $0x2c] sm:$0xf]
    %v467 = vld [vmem:[#allocation9 + $0x30] sm:$0xf]
    %v468 = vld [vmem:[#allocation9 + $0x34] sm:$0xf]
    %v469 = vld [vmem:[#allocation9 + $0x38] sm:$0xf]
    %v470 = vld [vmem:[#allocation9 + $0x3c] sm:$0xf]
    %v471 = vld [vmem:[#allocation9 + $0x40] sm:$0xf]
    %v472 = vld [vmem:[#allocation9 + $0x44] sm:$0xf]
    %v473 = vld [vmem:[#allocation9 + $0x48] sm:$0xf]
    %v474 = vld [vmem:[#allocation9 + $0x4c] sm:$0xf]
    %v475 = vld [vmem:[#allocation9 + $0x50] sm:$0xf]
    %v476 = vld [vmem:[#allocation9 + $0x54] sm:$0xf]
    %v477 = vld [vmem:[#allocation9 + $0x58] sm:$0xf]
    %v478 = vld [vmem:[#allocation9 + $0x5c] sm:$0xf]
    %v479 = vld [vmem:[#allocation9 + $0x60] sm:$0xf]
    %v480 = vld [vmem:[#allocation9 + $0x64] sm:$0xf]
    %v481 = vld [vmem:[#allocation9 + $0x68] sm:$0xf]
    %v482 = vld [vmem:[#allocation9 + $0x6c] sm:$0xf]
    %v483 = vld [vmem:[#allocation9 + $0x70] sm:$0xf]
    %v484 = vld [vmem:[#allocation9 + $0x74] sm:$0xf]
    %v485 = vld [vmem:[#allocation9 + $0x78] sm:$0xf]
    %v486 = vld [vmem:[#allocation9 + $0x7c] sm:$0xf]
    %v487 = vld [vmem:[%s5] sm:$0x1]
    %v489 = vlaneseq
    %v490 = vshrl.u32 %v489, 7
    %v491 = vsub.s32 0, %v490
    %v492 = vrot.slane %v487, %v491
    %v526 = vunpack.c.l.b16 %v455
    %v527 = vunpack.c.l.b16 %v456
    %v528 = vunpack.c.l.b16 %v457
    %v529 = vunpack.c.l.b16 %v458
    %v530 = vunpack.c.l.b16 %v459
    %v531 = vunpack.c.l.b16 %v460
    %v532 = vunpack.c.l.b16 %v461
    %v533 = vunpack.c.l.b16 %v462
    %v534 = vunpack.c.l.b16 %v463
    %v535 = vunpack.c.l.b16 %v464
    %v536 = vunpack.c.l.b16 %v465
    %v537 = vunpack.c.l.b16 %v466
    %v538 = vunpack.c.l.b16 %v467
    %v539 = vunpack.c.l.b16 %v468
    %v540 = vunpack.c.l.b16 %v469
    %v541 = vunpack.c.l.b16 %v470
    %v542 = vunpack.c.l.b16 %v471
    %v543 = vunpack.c.l.b16 %v472
    %v544 = vunpack.c.l.b16 %v473
    %v545 = vunpack.c.l.b16 %v474
    %v546 = vunpack.c.l.b16 %v475
    %v547 = vunpack.c.l.b16 %v476
    %v548 = vunpack.c.l.b16 %v477
    %v549 = vunpack.c.l.b16 %v478
    %v550 = vunpack.c.l.b16 %v479
    %v551 = vunpack.c.l.b16 %v480
    %v552 = vunpack.c.l.b16 %v481
    %v553 = vunpack.c.l.b16 %v482
    %v554 = vunpack.c.l.b16 %v483
    %v555 = vunpack.c.l.b16 %v484
    %v556 = vunpack.c.l.b16 %v485
    %v557 = vunpack.c.l.b16 %v486
    %v558 = vpack.c.b16 %v527, %v526
    %v559 = vpack.c.b16 %v529, %v528
    %v560 = vpack.c.b16 %v531, %v530
    %v561 = vpack.c.b16 %v533, %v532
    %v562 = vpack.c.b16 %v535, %v534
    %v563 = vpack.c.b16 %v537, %v536
    %v564 = vpack.c.b16 %v539, %v538
    %v565 = vpack.c.b16 %v541, %v540
    %v566 = vpack.c.b16 %v543, %v542
    %v567 = vpack.c.b16 %v545, %v544
    %v568 = vpack.c.b16 %v547, %v546
    %v569 = vpack.c.b16 %v549, %v548
    %v570 = vpack.c.b16 %v551, %v550
    %v571 = vpack.c.b16 %v553, %v552
    %v572 = vpack.c.b16 %v555, %v554
    %v573 = vpack.c.b16 %v557, %v556
    %590 = vmatprep.subr.bf16.mxu0 0
    %591 = vmatpush1.bf16.msra.mxu0 %v558
    %592 = vmatprep.subr.bf16.mxu0 0
    %593 = vmatpush1.bf16.msra.mxu0 %v559
    %594 = vmatprep.subr.bf16.mxu0 0
    %595 = vmatpush1.bf16.msra.mxu0 %v560
    %596 = vmatprep.subr.bf16.mxu0 0
    %597 = vmatpush1.bf16.msra.mxu0 %v561
    %598 = vmatprep.subr.bf16.mxu0 0
    %599 = vmatpush1.bf16.msra.mxu0 %v562
    %600 = vmatprep.subr.bf16.mxu0 0
    %601 = vmatpush1.bf16.msra.mxu0 %v563
    %602 = vmatprep.subr.bf16.mxu0 0
    %603 = vmatpush1.bf16.msra.mxu0 %v564
    %604 = vmatprep.subr.bf16.mxu0 0
    %605 = vmatpush1.bf16.msra.mxu0 %v565
    %606 = vmatprep.subr.bf16.mxu0 0
    %607 = vmatpush1.bf16.msra.mxu0 %v566
    %608 = vmatprep.subr.bf16.mxu0 0
    %609 = vmatpush1.bf16.msra.mxu0 %v567
    %610 = vmatprep.subr.bf16.mxu0 0
    %611 = vmatpush1.bf16.msra.mxu0 %v568
    %612 = vmatprep.subr.bf16.mxu0 0
    %613 = vmatpush1.bf16.msra.mxu0 %v569
    %614 = vmatprep.subr.bf16.mxu0 0
    %615 = vmatpush1.bf16.msra.mxu0 %v570
    %616 = vmatprep.subr.bf16.mxu0 0
    %617 = vmatpush1.bf16.msra.mxu0 %v571
    %618 = vmatprep.subr.bf16.mxu0 0
    %619 = vmatpush1.bf16.msra.mxu0 %v572
    %620 = vmatprep.subr.bf16.mxu0 0
    %621 = vmatpush1.bf16.msra.mxu0 %v573
    %622 = vmatprep.mubr.bf16.mxu0 %v454
    %623 = vmatmul.mubr.bf16.gmra.mrb[0].mxu0 %v453
    %v624 = vpop.f32.mrb[0].mxu0
    %v625 = vadd.f32 %v492, %v624
    %v626 = vpop.f32.mrb[0].mxu0
    %v627 = vpop.f32.mrb[0].mxu0
    %v628 = vpop.f32.mrb[0].mxu0
    %629 = vdwg.mxu0
    %630 = vst [vmem:[#allocation10] sm:$0xff] %v625
    // Predicated region
    $region34: #{tpu_custom_call.1} parent=1 // pred_check
      _
    $region35: #{tpu_custom_call.1} parent=1 // pred_check_branch
      %632 = sbr.rel (0) target = $region37
    $region36: #{tpu_custom_call.1} parent=1 // pred_region
      %s634 = ssub.s32 128, 128
      %635 = vsyncadd [#allocation6], %s634
      %s637 = sshll.u32 [#allocation10], 4
      %s638 = int_to_ptr.vmem [resolvable:$true] %s637
      %640 = dma.vmem_to_hbm [thread:$0]  %s638, 128, %s6, [#allocation6]
    $region37: #{tpu_custom_call.1} parent=1 // pred_fallthru
      _
    // Predicated region
    $region38: #{tpu_custom_call.1} parent=1 // pred_check
      _
    $region39: #{tpu_custom_call.1} parent=1 // pred_check_branch
      %642 = sbr.rel (0) target = $region41
    $region40: #{tpu_custom_call.1} parent=1 // pred_region
      %643 = dma.done [#allocation6], 128
    $region41: #{tpu_custom_call.1} parent=1 // pred_fallthru
      _
    %644 = vsyncpa [#allocation5], 1
    %645 = vsyncpa [#allocation8], 1
    %646 = vsyncpa [#allocation6], 1

</llo_original>
